<compile_context>
chip_gen: v7x
topology: tpu7x:2x2x1
jax: 0.10.0
libtpu: 0.0.40
codegen_flags: <defaults>
</compile_context>

<pallas_src>
import jax
import jax.numpy as jnp
from jax.experimental import pallas as pl
from jax.experimental.pallas import tpu as pltpu


def _round_up(x, m):
    return (x + m - 1) // m * m


def _token_visual_kernel(flags_ref, m_ref, o_ref):
    """flags_ref: [1, 1, tm] int32  (bit0=bold, bit1=italic, bit2=underline)
       m_ref    : [8, E]  float32   (rows: bias_eff, vb, vi, vu, 0, 0, 0, 0)
       o_ref    : [tm, E] out_dtype
    """
    tm = o_ref.shape[0]
    f = flags_ref[0]                                     # [1, tm] int32, lane-major
    f8 = jnp.broadcast_to(f, (8, tm))                    # sublane broadcast (cheap)
    row = jax.lax.broadcasted_iota(jnp.int32, (8, tm), 0)

    fb = (f8 & 1).astype(jnp.float32)
    fi = ((f8 >> 1) & 1).astype(jnp.float32)
    fu = ((f8 >> 2) & 1).astype(jnp.float32)
    one = jnp.ones((8, tm), jnp.float32)
    zero = jnp.zeros((8, tm), jnp.float32)

    # Pt[j, t] = coefficient of M row j for token t.  Tokens stay lane-major
    # here; the lane->sublane move happens inside the MXU contraction below,
    # not on the VPU/XLU.
    pt = jnp.where(row == 0, one,
         jnp.where(row == 1, fb,
         jnp.where(row == 2, fi,
         jnp.where(row == 3, fu, zero))))                # [8, tm]

    acc = jax.lax.dot_general(                           # [tm, E] = Pt^T @ M
        pt, m_ref[...],
        dimension_numbers=(((0,), (0,)), ((), ())),
        preferred_element_type=jnp.float32,
        precision=jax.lax.Precision.HIGHEST)
    o_ref[...] = acc.astype(o_ref.dtype)


def token_visual_embedding(bold_flags, italic_flags, underline_flags, params,
                           *, tm=1024, out_dtype=jnp.float32):
    """Forward pass of TokenVisualEmbedding.

    params: dict with
      eb/ei/eu : [2, E] embedding tables (bold / italic / underline)
      w        : [E, 3E] PyTorch Linear(3E, E) weight
      b        : [E]     Linear bias
    Returns [B, T, E] in out_dtype.
    """
    B, T = bold_flags.shape
    E = params["eb"].shape[1]
    N = B * T

    out_dtype = jnp.dtype(out_dtype)
    g = 16 if out_dtype.itemsize < 4 else 8          # sublane granule for out tile

    # ---- row-tile sizing + VMEM guard --------------------------------------
    tm = max(g, (int(tm) // g) * g)
    budget = 12 * 1024 * 1024                        # under v5e's 16 MiB scoped default

    def _vmem_est(t):
        return (2 * t * E * out_dtype.itemsize       # out block, double buffered
                + t * E * 4                          # f32 matmul result
                + 2 * 8 * E * 4                      # resident M (double buffered)
                + 2 * 8 * t * 4                      # flag block (sublane padded)
                + 8 * t * 4)                         # Pt temporary

    while tm > g and _vmem_est(tm) > budget:
        tm = max(g, (tm // 2 // g) * g)

    if tm >= N:                      # whole problem fits one row tile
        tm = _round_up(N, g)
        n_out = tm                   # at most g-1 padded rows; tiny slice below
    else:
        n_out = N                    # ragged tail handled by Pallas boundary masking
    grid_m = pl.cdiv(n_out, tm)

    # ---- one-time O(E^2) precompute (plain JAX, fp32-exact) -----------------
    hp = jax.lax.Precision.HIGHEST
    wt = params["w"].T.astype(jnp.float32)           # [3E, E]
    wb, wi, wu = wt[:E], wt[E:2 * E], wt[2 * E:]
    eb = params["eb"].astype(jnp.float32)
    ei = params["ei"].astype(jnp.float32)
    eu = params["eu"].astype(jnp.float32)
    vb = jnp.dot(eb[1] - eb[0], wb, precision=hp)     # [E]
    vi = jnp.dot(ei[1] - ei[0], wi, precision=hp)
    vu = jnp.dot(eu[1] - eu[0], wu, precision=hp)
    bias_eff = (params["b"].astype(jnp.float32)
                + jnp.dot(eb[0], wb, precision=hp)
                + jnp.dot(ei[0], wi, precision=hp)
                + jnp.dot(eu[0], wu, precision=hp))   # [E]
    m_mat = jnp.concatenate(
        [bias_eff[None], vb[None], vi[None], vu[None],
         jnp.zeros((4, E), jnp.float32)], axis=0)     # [8, E]

    # ---- bit-pack the three 0/1 flags into one lane-dense int32 stream ------
    # NOTE: assumes flags are 0/1 (the nn.Embedding(2, .) contract).
    flags = ((bold_flags.astype(jnp.int32) & 1)
             | ((italic_flags.astype(jnp.int32) & 1) << 1)
             | ((underline_flags.astype(jnp.int32) & 1) << 2)).reshape(-1)   # [N]
    n_flags = grid_m * tm
    if n_flags != N:
        flags = jnp.pad(flags, (0, n_flags - N))
    flags = flags.reshape(grid_m, 1, tm)              # lane-dense: tm*4 B per tile

    out = pl.pallas_call(
        _token_visual_kernel,
        out_shape=jax.ShapeDtypeStruct((n_out, E), out_dtype),
        grid_spec=pltpu.PrefetchScalarGridSpec(
            num_scalar_prefetch=0,
            grid=(grid_m,),
            in_specs=[
                pl.BlockSpec((1, 1, tm), lambda i: (i, 0, 0)),   # packed flags
                pl.BlockSpec((8, E), lambda i: (0, 0)),          # resident M
            ],
            out_specs=pl.BlockSpec((tm, E), lambda i: (i, 0)),
        ),
        compiler_params=pltpu.CompilerParams(
            dimension_semantics=("parallel",)),       # shard grid across v7x's 2 TCs
    )(flags, m_mat)

    if n_out != N:
        out = out[:N]                                 # only in the tiny single-tile case
    return out.reshape(B, T, E)


def init_params(key, embed_dim):
    """Deterministic synthetic parameters matching TokenVisualEmbedding.__init__."""
    ks = jax.random.split(key, 5)
    eb = jax.random.normal(ks[0], (2, embed_dim), jnp.float32)
    ei = jax.random.normal(ks[1], (2, embed_dim), jnp.float32)
    eu = jax.random.normal(ks[2], (2, embed_dim), jnp.float32)
    # PyTorch Linear(3E, E): weight W [E, 3E], y = x @ W.T + b.
    w = jax.random.normal(ks[3], (embed_dim, 3 * embed_dim), jnp.float32) * 0.02
    b = jax.random.normal(ks[4], (embed_dim,), jnp.float32) * 0.02
    return {"eb": eb, "ei": ei, "eu": eu, "w": w, "b": b}


def reference_forward(bold, italic, under, params):
    """Plain-JAX reference matching the PyTorch forward exactly."""
    xb = params["eb"][bold]                                  # [B, T, E]
    xi = params["ei"][italic]
    xu = params["eu"][under]
    combined = jnp.concatenate([xb, xi, xu], axis=-1)        # [B, T, 3E]
    return jnp.dot(combined, params["w"].T,
                   precision=jax.lax.Precision.HIGHEST) + params["b"]


def _run_case(seed, B, T, E, out_dtype, atol, rtol):
    kp, kb, ki, ku = jax.random.split(jax.random.PRNGKey(seed), 4)
    params = init_params(kp, E)
    bold = jax.random.bernoulli(kb, 0.5, (B, T)).astype(jnp.int32)
    italic = jax.random.bernoulli(ki, 0.5, (B, T)).astype(jnp.int32)
    under = jax.random.bernoulli(ku, 0.5, (B, T)).astype(jnp.int32)

    out = token_visual_embedding(bold, italic, under, params, out_dtype=out_dtype)
    out = jax.block_until_ready(out)
    ref = reference_forward(bold, italic, under, params)

    assert out.shape == (B, T, E), (out.shape, (B, T, E))
    assert out.dtype == out_dtype, (out.dtype, out_dtype)
    diff = jnp.max(jnp.abs(out.astype(jnp.float32) - ref))
    assert jnp.allclose(out.astype(jnp.float32), ref, atol=atol, rtol=rtol), (
        f"max abs diff {diff} for case B={B} T={T} E={E} dtype={out_dtype}")


if __name__ == "__main__":
    # Main check: lane-dense E (multiple of 128), small B/T, f32 output.
    _run_case(0, B=2, T=8, E=128, out_dtype=jnp.float32, atol=1e-5, rtol=1e-5)
    # Ragged / non-128 check: N and E not multiples of the tile / lane widths.
    _run_case(1, B=2, T=13, E=96, out_dtype=jnp.float32, atol=1e-5, rtol=1e-5)
    # Multi-tile check with a ragged last row-block and bf16 output
    # (exercises boundary masking + the halved-write-traffic path).
    _run_case(2, B=3, T=700, E=128, out_dtype=jnp.bfloat16, atol=5e-2, rtol=5e-2)
    print("KERNEL_OK")
</pallas_src>

<mosaic_0001>
module attributes {stable_mosaic.version = 11 : i64} {
  func.func @_token_visual_kernel(%arg0: i32, %arg1: memref<1x1x16xi32, #tpu.memory_space<vmem>>, %arg2: memref<8x128xf32, #tpu.memory_space<vmem>>, %arg3: memref<16x128xf32, #tpu.memory_space<vmem>>) attributes {dimension_semantics = [#tpu.dimension_semantics<parallel>], iteration_bounds = array<i64: 1>, scalar_prefetch = 0 : i64, scratch_operands = 0 : i64, tpu.core_type = #tpu.core_type<tc>, window_params = [{transform_indices = @transform_0, window_bounds = array<i64: 1, 1, 16>}, {pipeline_mode = #tpu.pipeline_mode<synchronous>, transform_indices = @transform_1, window_bounds = array<i64: 8, 128>}, {transform_indices = @transform_2, window_bounds = array<i64: 16, 128>}]} {
    %c0 = arith.constant 0 : index
    %c0_0 = arith.constant 0 : index
    %c0_1 = arith.constant 0 : index
    %0 = vector.load %arg1[%c0, %c0_0, %c0_1] : memref<1x1x16xi32, #tpu.memory_space<vmem>>, vector<1x1x16xi32>
    %1 = vector.shape_cast %0 : vector<1x1x16xi32> to vector<1x16xi32>
    %2 = vector.shape_cast %1 : vector<1x16xi32> to vector<1x16xi32>
    %3 = vector.broadcast %2 : vector<1x16xi32> to vector<8x16xi32>
    %4 = tpu.iota {dimensions = array<i32: 0>} : vector<8x16xi32>
    %c1_i32 = arith.constant 1 : i32
    %5 = vector.broadcast %c1_i32 : i32 to vector<8x16xi32>
    %6 = arith.andi %3, %5 : vector<8x16xi32>
    %7 = arith.sitofp %6 : vector<8x16xi32> to vector<8x16xf32>
    %c1_i32_2 = arith.constant 1 : i32
    %8 = vector.broadcast %c1_i32_2 : i32 to vector<8x16xi32>
    %9 = arith.shrsi %3, %8 : vector<8x16xi32>
    %c1_i32_3 = arith.constant 1 : i32
    %10 = vector.broadcast %c1_i32_3 : i32 to vector<8x16xi32>
    %11 = arith.andi %9, %10 : vector<8x16xi32>
    %12 = arith.sitofp %11 : vector<8x16xi32> to vector<8x16xf32>
    %c2_i32 = arith.constant 2 : i32
    %13 = vector.broadcast %c2_i32 : i32 to vector<8x16xi32>
    %14 = arith.shrsi %3, %13 : vector<8x16xi32>
    %c1_i32_4 = arith.constant 1 : i32
    %15 = vector.broadcast %c1_i32_4 : i32 to vector<8x16xi32>
    %16 = arith.andi %14, %15 : vector<8x16xi32>
    %17 = arith.sitofp %16 : vector<8x16xi32> to vector<8x16xf32>
    %cst = arith.constant 1.000000e+00 : f32
    %18 = vector.broadcast %cst : f32 to vector<8x16xf32>
    %cst_5 = arith.constant 0.000000e+00 : f32
    %19 = vector.broadcast %cst_5 : f32 to vector<8x16xf32>
    %c0_i32 = arith.constant 0 : i32
    %20 = vector.broadcast %c0_i32 : i32 to vector<8x16xi32>
    %21 = arith.cmpi eq, %4, %20 : vector<8x16xi32>
    %c1_i32_6 = arith.constant 1 : i32
    %22 = vector.broadcast %c1_i32_6 : i32 to vector<8x16xi32>
    %23 = arith.cmpi eq, %4, %22 : vector<8x16xi32>
    %c2_i32_7 = arith.constant 2 : i32
    %24 = vector.broadcast %c2_i32_7 : i32 to vector<8x16xi32>
    %25 = arith.cmpi eq, %4, %24 : vector<8x16xi32>
    %c3_i32 = arith.constant 3 : i32
    %26 = vector.broadcast %c3_i32 : i32 to vector<8x16xi32>
    %27 = arith.cmpi eq, %4, %26 : vector<8x16xi32>
    %28 = arith.select %27, %17, %19 : vector<8x16xi1>, vector<8x16xf32>
    %29 = arith.select %25, %12, %28 : vector<8x16xi1>, vector<8x16xf32>
    %30 = arith.select %23, %7, %29 : vector<8x16xi1>, vector<8x16xf32>
    %31 = arith.select %21, %18, %30 : vector<8x16xi1>, vector<8x16xf32>
    %c0_8 = arith.constant 0 : index
    %c0_9 = arith.constant 0 : index
    %32 = vector.load %arg2[%c0_8, %c0_9] : memref<8x128xf32, #tpu.memory_space<vmem>>, vector<8x128xf32>
    %cst_10 = arith.constant dense<0.000000e+00> : vector<16x128xf32>
    %33 = tpu.matmul %31, %32, %cst_10 {dimension_numbers = #tpu.dot_dimension_numbers<[0], [0], [1], [1], [0, 1, 1, 1], [], []>, precision = #tpu.contract_precision<fp32>} : vector<8x16xf32>, vector<8x128xf32>, vector<16x128xf32> -> vector<16x128xf32>
    %c0_11 = arith.constant 0 : index
    %c0_12 = arith.constant 0 : index
    %34 = vector.load %arg3[%c0_11, %c0_12] : memref<16x128xf32, #tpu.memory_space<vmem>>, vector<16x128xf32>
    tpu.vector_store %arg3[%c0_11, %c0_12], %33 {strides = array<i32>} : memref<16x128xf32, #tpu.memory_space<vmem>>, vector<16x128xf32>,
    return
  }
  func.func @transform_0(%arg0: i32) -> (i32, i32, i32) {
    %c0_i32 = arith.constant 0 : i32
    %c0_i32_0 = arith.constant 0 : i32
    %c0_i32_1 = arith.constant 0 : i32
    return %arg0, %c0_i32, %c0_i32_0 : i32, i32, i32
  }
  func.func @transform_1(%arg0: i32) -> (i32, i32) {
    %c0_i32 = arith.constant 0 : i32
    %c0_i32_0 = arith.constant 0 : i32
    %c0_i32_1 = arith.constant 0 : i32
    return %c0_i32, %c0_i32_0 : i32, i32
  }
  func.func @transform_2(%arg0: i32) -> (i32, i32) {
    %c0_i32 = arith.constant 0 : i32
    %c0_i32_0 = arith.constant 0 : i32
    return %arg0, %c0_i32 : i32, i32
  }
}

</mosaic_0001>

<llo_original>
// kernel: tpu_custom_call.1
$region0: #{tpu_custom_call.1}
  #allocation0 [shape = 'u32[]', space=smem, size = 0x4, offset = 0x4, fixed_abs, tag = 'smem constant byte address 0x4 - core index']
  #allocation1 [shape = 'u32[144,128]{1,0:T(1,128)}', space=vmem, size = 0x12000, scoped, tag = 'internal scratch']
  %s0 = inlined_call_operand.hbm [shape: s32[1,1,16], index: 0, kind: input, shape index: {}]
  %s1 = inlined_call_operand.hbm [shape: f32[8,128], index: 1, kind: input, shape index: {}]
  %s2 = inlined_call_operand.hbm [shape: f32[16,128], index: 2, kind: output, shape index: {}]
  %s3 = sld [smem:[#allocation0]]
  $region26: #{tpu_custom_call.1} parent=0
    _
  %s5 = ssub.s32 1, %s3
  %s6 = scalar_select 0, %s5, %s3
  $region1: #{tpu_custom_call.1} parent=0
    #allocation2 [shape = 'u8[512]{0}', space=vmem, size = 0x400, scoped, tag = 'input window, operand 0, single buffered']
    #allocation3 [shape = 's32[1]{0}', space=sflag, size = 0x4, scoped, tag = 'scoped memory for tpu_custom_call.1']
    #allocation4 [shape = 's32[1]{0}', space=sflag, size = 0x4, scoped, tag = 'scoped memory for tpu_custom_call.1']
    #allocation5 [shape = 'u8[4096]{0}', space=vmem, size = 0x1000, scoped, tag = 'input window, operand 1, single buffered']
    #allocation6 [shape = 's32[1]{0}', space=sflag, size = 0x4, scoped, tag = 'scoped memory for tpu_custom_call.1']
    #allocation7 [shape = 'u8[8192]{0}', space=vmem, size = 0x2000, scoped, tag = 'output window, operand 0, single buffered']
    %7 = vsyncpa [#allocation3], 0
    %8 = vsyncpa [#allocation6], 0
    %9 = vsyncpa [#allocation4], 0
    // Predicated region
    $region2: #{tpu_custom_call.1} parent=1 // pred_check
      _
    $region3: #{tpu_custom_call.1} parent=1 // pred_check_branch
      %11 = sbr.rel (0) target = $region5
    $region4: #{tpu_custom_call.1} parent=1 // pred_region
      %s13 = ssub.s32 16, 16
      %14 = vsyncadd [#allocation3], %s13
      %s16 = sshll.u32 [#allocation2], 4
      %s17 = int_to_ptr.vmem [resolvable:$true] %s16
      %19 = dma.hbm_to_vmem [thread:$0]  %s0, 16, %s17, [#allocation3]
    $region5: #{tpu_custom_call.1} parent=1 // pred_fallthru
      _
    // Predicated region
    $region6: #{tpu_custom_call.1} parent=1 // pred_check
      _
    $region7: #{tpu_custom_call.1} parent=1 // pred_check_branch
      %21 = sbr.rel (0) target = $region9
    $region8: #{tpu_custom_call.1} parent=1 // pred_region
      %s23 = ssub.s32 128, 128
      %24 = vsyncadd [#allocation6], %s23
      %s26 = sshll.u32 [#allocation5], 4
      %s27 = int_to_ptr.vmem [resolvable:$true] %s26
      %29 = dma.hbm_to_vmem [thread:$0]  %s1, 128, %s27, [#allocation6]
    $region9: #{tpu_custom_call.1} parent=1 // pred_fallthru
      _
    // Predicated region
    $region10: #{tpu_custom_call.1} parent=1 // pred_check
      _
    $region11: #{tpu_custom_call.1} parent=1 // pred_check_branch
      %31 = sbr.rel (0) target = $region13
    $region12: #{tpu_custom_call.1} parent=1 // pred_region
      %32 = dma.done [#allocation3], 16
    $region13: #{tpu_custom_call.1} parent=1 // pred_fallthru
      _
    // Predicated region
    $region14: #{tpu_custom_call.1} parent=1 // pred_check
      _
    $region15: #{tpu_custom_call.1} parent=1 // pred_check_branch
      %34 = sbr.rel (0) target = $region17
    $region16: #{tpu_custom_call.1} parent=1 // pred_region
      %35 = dma.done [#allocation6], 128
    $region17: #{tpu_custom_call.1} parent=1 // pred_fallthru
      _
    %v36 = vld [vmem:[#allocation2] sm:$0x1]
    %v37 = vlaneseq
    %v38 = vshrl.u32 %v37, 7
    %v39 = vsub.s32 0, %v38
    %v40 = vrot.slane %v36, %v39
    %v41 = vlaneseq
    %v42 = vshrl.u32 %v41, 7
    %v43 = vand.u32 %v40, 1
    %v44 = vcvt.s32.f32 %v43
    %v45 = vshra.s32 %v40, 1
    %v46 = vand.u32 %v45, 1
    %v47 = vcvt.s32.f32 %v46
    %v48 = vshra.s32 %v40, 2
    %v49 = vand.u32 %v48, 1
    %v50 = vcvt.s32.f32 %v49
    %vm51 = vcmp.eq.s32.totalorder %v42, 0
    %vm52 = vcmp.eq.s32.totalorder %v42, 1
    %vm53 = vcmp.eq.s32.totalorder %v42, 2
    %vm54 = vcmp.eq.s32.totalorder %v42, 3
    %v55 = vsel %vm54, %v50, 0.0
    %v56 = vsel %vm53, %v47, %v55
    %v57 = vsel %vm52, %v44, %v56
    %v58 = vsel %vm51, 1.0, %v57
    %v59 = vld [vmem:[#allocation5] sm:$0xff]
    %60 = vxpose.xlu0.b32.start [1/16] %v58, 128
    %61 = vxpose.xlu0.b32.cont [2/16] 0.0, 128
    %62 = vxpose.xlu0.b32.cont [3/16] 0.0, 128
    %63 = vxpose.xlu0.b32.cont [4/16] 0.0, 128
    %64 = vxpose.xlu0.b32.cont [5/16] 0.0, 128
    %65 = vxpose.xlu0.b32.cont [6/16] 0.0, 128
    %66 = vxpose.xlu0.b32.cont [7/16] 0.0, 128
    %67 = vxpose.xlu0.b32.cont [8/16] 0.0, 128
    %68 = vxpose.xlu0.b32.cont [9/16] 0.0, 128
    %69 = vxpose.xlu0.b32.cont [10/16] 0.0, 128
    %70 = vxpose.xlu0.b32.cont [11/16] 0.0, 128
    %71 = vxpose.xlu0.b32.cont [12/16] 0.0, 128
    %72 = vxpose.xlu0.b32.cont [13/16] 0.0, 128
    %73 = vxpose.xlu0.b32.cont [14/16] 0.0, 128
    %74 = vxpose.xlu0.b32.cont [15/16] 0.0, 128
    %75 = vxpose.xlu0.b32.end [16/16] 0.0, 128
    %v76 = vpop.trf.xlu0
    %v77 = vpop.trf.xlu0
    %v78 = vpop.trf.xlu0
    %v79 = vpop.trf.xlu0
    %v80 = vpop.trf.xlu0
    %v81 = vpop.trf.xlu0
    %v82 = vpop.trf.xlu0
    %v83 = vpop.trf.xlu0
    %v84 = vpop.trf.xlu0
    %v85 = vpop.trf.xlu0
    %v86 = vpop.trf.xlu0
    %v87 = vpop.trf.xlu0
    %v88 = vpop.trf.xlu0
    %v89 = vpop.trf.xlu0
    %v90 = vpop.trf.xlu0
    %v91 = vpop.trf.xlu0
    %vm92 = vcmask 64512
    %v94 = vsel %vm92, %v76, 0
    %v97 = vsel %vm92, %v77, 0
    %99 = vmatprep.subr.mxu0 0.0
    %v100 = vand.u32 %v59, 4294901760
    %101 = vmatpush1.msra.mxu0 %v100
    %102 = vmatprep.subr.mxu0 0.0
    %103 = vmatpush1.msra.mxu0 0.0
    %104 = vmatprep.subr.mxu0 0.0
    %105 = vmatpush1.msra.mxu0 0.0
    %106 = vmatprep.subr.mxu0 0.0
    %107 = vmatpush1.msra.mxu0 0.0
    %108 = vmatprep.subr.mxu0 0.0
    %109 = vmatpush1.msra.mxu0 0.0
    %110 = vmatprep.subr.mxu0 0.0
    %111 = vmatpush1.msra.mxu0 0.0
    %112 = vmatprep.subr.mxu0 0.0
    %113 = vmatpush1.msra.mxu0 0.0
    %114 = vmatprep.subr.mxu0 0.0
    %115 = vmatpush1.msra.mxu0 0.0
    %116 = vmatprep.subr.mxu0 0.0
    %117 = vmatpush1.msra.mxu0 0.0
    %118 = vmatprep.subr.mxu0 0.0
    %119 = vmatpush1.msra.mxu0 0.0
    %120 = vmatprep.subr.mxu0 0.0
    %121 = vmatpush1.msra.mxu0 0.0
    %122 = vmatprep.subr.mxu0 0.0
    %123 = vmatpush1.msra.mxu0 0.0
    %124 = vmatprep.subr.mxu0 0.0
    %125 = vmatpush1.msra.mxu0 0.0
    %126 = vmatprep.subr.mxu0 0.0
    %127 = vmatpush1.msra.mxu0 0.0
    %128 = vmatprep.subr.mxu0 0.0
    %129 = vmatpush1.msra.mxu0 0.0
    %130 = vmatprep.subr.mxu0 0.0
    %131 = vmatpush1.msra.mxu0 0.0
    %132 = vmatprep.subr.mxu0 0.0
    %133 = vmatpush1.msra.mxu0 0.0
    %134 = vmatprep.subr.mxu0 0.0
    %135 = vmatpush1.msra.mxu0 0.0
    %136 = vmatprep.subr.mxu0 0.0
    %137 = vmatpush1.msra.mxu0 0.0
    %138 = vmatprep.subr.mxu0 0.0
    %139 = vmatpush1.msra.mxu0 0.0
    %140 = vmatprep.subr.mxu0 0.0
    %141 = vmatpush1.msra.mxu0 0.0
    %142 = vmatprep.subr.mxu0 0.0
    %143 = vmatpush1.msra.mxu0 0.0
    %144 = vmatprep.subr.mxu0 0.0
    %145 = vmatpush1.msra.mxu0 0.0
    %146 = vmatprep.subr.mxu0 0.0
    %147 = vmatpush1.msra.mxu0 0.0
    %148 = vmatprep.subr.mxu0 0.0
    %149 = vmatpush1.msra.mxu0 0.0
    %150 = vmatprep.subr.mxu0 0.0
    %151 = vmatpush1.msra.mxu0 0.0
    %152 = vmatprep.subr.mxu0 0.0
    %153 = vmatpush1.msra.mxu0 0.0
    %154 = vmatprep.subr.mxu0 0.0
    %155 = vmatpush1.msra.mxu0 0.0
    %156 = vmatprep.subr.mxu0 0.0
    %157 = vmatpush1.msra.mxu0 0.0
    %158 = vmatprep.subr.mxu0 0.0
    %159 = vmatpush1.msra.mxu0 0.0
    %160 = vmatprep.subr.mxu0 0.0
    %161 = vmatpush1.msra.mxu0 0.0
    %162 = vmatprep.subr.mxu0 0.0
    %163 = vmatpush1.msra.mxu0 0.0
    %164 = vmatprep.mubr.f32.mxu0 0.0
    %v165 = vand.u32 %v94, 4294901760
    %v166 = vsub.f32 %v94, %v165
    %v167 = vand.u32 %v166, 4294901760
    %v168 = vsub.f32 %v166, %v167
    %v169 = vand.u32 %v168, 4294901760
    %170 = vmatmul.mubr.f32.gmra.mrb[0].mxu0 %v169
    %v171 = vpop.f32.mrb[0].mxu0
    %v172 = vadd.f32 0.0, %v171
    %v173 = vpop.f32.mrb[0].mxu0
    %174 = vmatprep.mubr.f32.mxu0 0.0
    %v175 = vand.u32 %v97, 4294901760
    %v176 = vsub.f32 %v97, %v175
    %v177 = vand.u32 %v176, 4294901760
    %v178 = vsub.f32 %v176, %v177
    %v179 = vand.u32 %v178, 4294901760
    %180 = vmatmul.mubr.f32.gmra.mrb[0].mxu0 %v179
    %v181 = vpop.f32.mrb[0].mxu0
    %v182 = vadd.f32 0.0, %v181
    %v183 = vpop.f32.mrb[0].mxu0
    %184 = vdwg.mxu0
    %185 = vmatprep.subr.mxu0 0.0
    %v186 = vand.u32 %v59, 4294901760
    %v187 = vsub.f32 %v59, %v186
    %v188 = vand.u32 %v187, 4294901760
    %v189 = vsub.f32 %v187, %v188
    %v190 = vand.u32 %v189, 4294901760
    %191 = vmatpush1.msra.mxu0 %v190
    %192 = vmatprep.subr.mxu0 0.0
    %193 = vmatpush1.msra.mxu0 0.0
    %194 = vmatprep.subr.mxu0 0.0
    %195 = vmatpush1.msra.mxu0 0.0
    %196 = vmatprep.subr.mxu0 0.0
    %197 = vmatpush1.msra.mxu0 0.0
    %198 = vmatprep.subr.mxu0 0.0
    %199 = vmatpush1.msra.mxu0 0.0
    %200 = vmatprep.subr.mxu0 0.0
    %201 = vmatpush1.msra.mxu0 0.0
    %202 = vmatprep.subr.mxu0 0.0
    %203 = vmatpush1.msra.mxu0 0.0
    %204 = vmatprep.subr.mxu0 0.0
    %205 = vmatpush1.msra.mxu0 0.0
    %206 = vmatprep.subr.mxu0 0.0
    %207 = vmatpush1.msra.mxu0 0.0
    %208 = vmatprep.subr.mxu0 0.0
    %209 = vmatpush1.msra.mxu0 0.0
    %210 = vmatprep.subr.mxu0 0.0
    %211 = vmatpush1.msra.mxu0 0.0
    %212 = vmatprep.subr.mxu0 0.0
    %213 = vmatpush1.msra.mxu0 0.0
    %214 = vmatprep.subr.mxu0 0.0
    %215 = vmatpush1.msra.mxu0 0.0
    %216 = vmatprep.subr.mxu0 0.0
    %217 = vmatpush1.msra.mxu0 0.0
    %218 = vmatprep.subr.mxu0 0.0
    %219 = vmatpush1.msra.mxu0 0.0
    %220 = vmatprep.subr.mxu0 0.0
    %221 = vmatpush1.msra.mxu0 0.0
    %222 = vmatprep.subr.mxu0 0.0
    %223 = vmatpush1.msra.mxu0 0.0
    %224 = vmatprep.subr.mxu0 0.0
    %225 = vmatpush1.msra.mxu0 0.0
    %226 = vmatprep.subr.mxu0 0.0
    %227 = vmatpush1.msra.mxu0 0.0
    %228 = vmatprep.subr.mxu0 0.0
    %229 = vmatpush1.msra.mxu0 0.0
    %230 = vmatprep.subr.mxu0 0.0
    %231 = vmatpush1.msra.mxu0 0.0
    %232 = vmatprep.subr.mxu0 0.0
    %233 = vmatpush1.msra.mxu0 0.0
    %234 = vmatprep.subr.mxu0 0.0
    %235 = vmatpush1.msra.mxu0 0.0
    %236 = vmatprep.subr.mxu0 0.0
    %237 = vmatpush1.msra.mxu0 0.0
    %238 = vmatprep.subr.mxu0 0.0
    %239 = vmatpush1.msra.mxu0 0.0
    %240 = vmatprep.subr.mxu0 0.0
    %241 = vmatpush1.msra.mxu0 0.0
    %242 = vmatprep.subr.mxu0 0.0
    %243 = vmatpush1.msra.mxu0 0.0
    %244 = vmatprep.subr.mxu0 0.0
    %245 = vmatpush1.msra.mxu0 0.0
    %246 = vmatprep.subr.mxu0 0.0
    %247 = vmatpush1.msra.mxu0 0.0
    %248 = vmatprep.subr.mxu0 0.0
    %249 = vmatpush1.msra.mxu0 0.0
    %250 = vmatprep.subr.mxu0 0.0
    %251 = vmatpush1.msra.mxu0 0.0
    %252 = vmatprep.subr.mxu0 0.0
    %253 = vmatpush1.msra.mxu0 0.0
    %254 = vmatprep.mubr.f32.mxu0 0.0
    %v255 = vand.u32 %v94, 4294901760
    %256 = vmatmul.mubr.f32.gmra.mrb[0].mxu0 %v255
    %v257 = vpop.f32.mrb[0].mxu0
    %v258 = vadd.f32 %v172, %v257
    %v259 = vpop.f32.mrb[0].mxu0
    %260 = vmatprep.mubr.f32.mxu0 0.0
    %v261 = vand.u32 %v97, 4294901760
    %262 = vmatmul.mubr.f32.gmra.mrb[0].mxu0 %v261
    %v263 = vpop.f32.mrb[0].mxu0
    %v264 = vadd.f32 %v182, %v263
    %v265 = vpop.f32.mrb[0].mxu0
    %266 = vdwg.mxu0
    %267 = vmatprep.subr.mxu0 0.0
    %v268 = vand.u32 %v59, 4294901760
    %v269 = vsub.f32 %v59, %v268
    %270 = vmatpush1.msra.mxu0 %v269
    %271 = vmatprep.subr.mxu0 0.0
    %272 = vmatpush1.msra.mxu0 0.0
    %273 = vmatprep.subr.mxu0 0.0
    %274 = vmatpush1.msra.mxu0 0.0
    %275 = vmatprep.subr.mxu0 0.0
    %276 = vmatpush1.msra.mxu0 0.0
    %277 = vmatprep.subr.mxu0 0.0
    %278 = vmatpush1.msra.mxu0 0.0
    %279 = vmatprep.subr.mxu0 0.0
    %280 = vmatpush1.msra.mxu0 0.0
    %281 = vmatprep.subr.mxu0 0.0
    %282 = vmatpush1.msra.mxu0 0.0
    %283 = vmatprep.subr.mxu0 0.0
    %284 = vmatpush1.msra.mxu0 0.0
    %285 = vmatprep.subr.mxu0 0.0
    %286 = vmatpush1.msra.mxu0 0.0
    %287 = vmatprep.subr.mxu0 0.0
    %288 = vmatpush1.msra.mxu0 0.0
    %289 = vmatprep.subr.mxu0 0.0
    %290 = vmatpush1.msra.mxu0 0.0
    %291 = vmatprep.subr.mxu0 0.0
    %292 = vmatpush1.msra.mxu0 0.0
    %293 = vmatprep.subr.mxu0 0.0
    %294 = vmatpush1.msra.mxu0 0.0
    %295 = vmatprep.subr.mxu0 0.0
    %296 = vmatpush1.msra.mxu0 0.0
    %297 = vmatprep.subr.mxu0 0.0
    %298 = vmatpush1.msra.mxu0 0.0
    %299 = vmatprep.subr.mxu0 0.0
    %300 = vmatpush1.msra.mxu0 0.0
    %301 = vmatprep.subr.mxu0 0.0
    %302 = vmatpush1.msra.mxu0 0.0
    %303 = vmatprep.subr.mxu0 0.0
    %304 = vmatpush1.msra.mxu0 0.0
    %305 = vmatprep.subr.mxu0 0.0
    %306 = vmatpush1.msra.mxu0 0.0
    %307 = vmatprep.subr.mxu0 0.0
    %308 = vmatpush1.msra.mxu0 0.0
    %309 = vmatprep.subr.mxu0 0.0
    %310 = vmatpush1.msra.mxu0 0.0
    %311 = vmatprep.subr.mxu0 0.0
    %312 = vmatpush1.msra.mxu0 0.0
    %313 = vmatprep.subr.mxu0 0.0
    %314 = vmatpush1.msra.mxu0 0.0
    %315 = vmatprep.subr.mxu0 0.0
    %316 = vmatpush1.msra.mxu0 0.0
    %317 = vmatprep.subr.mxu0 0.0
    %318 = vmatpush1.msra.mxu0 0.0
    %319 = vmatprep.subr.mxu0 0.0
    %320 = vmatpush1.msra.mxu0 0.0
    %321 = vmatprep.subr.mxu0 0.0
    %322 = vmatpush1.msra.mxu0 0.0
    %323 = vmatprep.subr.mxu0 0.0
    %324 = vmatpush1.msra.mxu0 0.0
    %325 = vmatprep.subr.mxu0 0.0
    %326 = vmatpush1.msra.mxu0 0.0
    %327 = vmatprep.subr.mxu0 0.0
    %328 = vmatpush1.msra.mxu0 0.0
    %329 = vmatprep.subr.mxu0 0.0
    %330 = vmatpush1.msra.mxu0 0.0
    %331 = vmatprep.subr.mxu0 0.0
    %332 = vmatpush1.msra.mxu0 0.0
    %333 = vmatprep.mubr.f32.mxu0 0.0
    %v334 = vand.u32 %v94, 4294901760
    %v335 = vsub.f32 %v94, %v334
    %336 = vmatmul.mubr.f32.gmra.mrb[0].mxu0 %v335
    %v337 = vpop.f32.mrb[0].mxu0
    %v338 = vadd.f32 %v258, %v337
    %v339 = vpop.f32.mrb[0].mxu0
    %340 = vmatprep.mubr.f32.mxu0 0.0
    %v341 = vand.u32 %v97, 4294901760
    %v342 = vsub.f32 %v97, %v341
    %343 = vmatmul.mubr.f32.gmra.mrb[0].mxu0 %v342
    %v344 = vpop.f32.mrb[0].mxu0
    %v345 = vadd.f32 %v264, %v344
    %v346 = vpop.f32.mrb[0].mxu0
    %347 = vdwg.mxu0
    %348 = vmatprep.subr.mxu0 0.0
    %v349 = vand.u32 %v59, 4294901760
    %350 = vmatpush1.msra.mxu0 %v349
    %351 = vmatprep.subr.mxu0 0.0
    %352 = vmatpush1.msra.mxu0 0.0
    %353 = vmatprep.subr.mxu0 0.0
    %354 = vmatpush1.msra.mxu0 0.0
    %355 = vmatprep.subr.mxu0 0.0
    %356 = vmatpush1.msra.mxu0 0.0
    %357 = vmatprep.subr.mxu0 0.0
    %358 = vmatpush1.msra.mxu0 0.0
    %359 = vmatprep.subr.mxu0 0.0
    %360 = vmatpush1.msra.mxu0 0.0
    %361 = vmatprep.subr.mxu0 0.0
    %362 = vmatpush1.msra.mxu0 0.0
    %363 = vmatprep.subr.mxu0 0.0
    %364 = vmatpush1.msra.mxu0 0.0
    %365 = vmatprep.subr.mxu0 0.0
    %366 = vmatpush1.msra.mxu0 0.0
    %367 = vmatprep.subr.mxu0 0.0
    %368 = vmatpush1.msra.mxu0 0.0
    %369 = vmatprep.subr.mxu0 0.0
    %370 = vmatpush1.msra.mxu0 0.0
    %371 = vmatprep.subr.mxu0 0.0
    %372 = vmatpush1.msra.mxu0 0.0
    %373 = vmatprep.subr.mxu0 0.0
    %374 = vmatpush1.msra.mxu0 0.0
    %375 = vmatprep.subr.mxu0 0.0
    %376 = vmatpush1.msra.mxu0 0.0
    %377 = vmatprep.subr.mxu0 0.0
    %378 = vmatpush1.msra.mxu0 0.0
    %379 = vmatprep.subr.mxu0 0.0
    %380 = vmatpush1.msra.mxu0 0.0
    %381 = vmatprep.subr.mxu0 0.0
    %382 = vmatpush1.msra.mxu0 0.0
    %383 = vmatprep.subr.mxu0 0.0
    %384 = vmatpush1.msra.mxu0 0.0
    %385 = vmatprep.subr.mxu0 0.0
    %386 = vmatpush1.msra.mxu0 0.0
    %387 = vmatprep.subr.mxu0 0.0
    %388 = vmatpush1.msra.mxu0 0.0
    %389 = vmatprep.subr.mxu0 0.0
    %390 = vmatpush1.msra.mxu0 0.0
    %391 = vmatprep.subr.mxu0 0.0
    %392 = vmatpush1.msra.mxu0 0.0
    %393 = vmatprep.subr.mxu0 0.0
    %394 = vmatpush1.msra.mxu0 0.0
    %395 = vmatprep.subr.mxu0 0.0
    %396 = vmatpush1.msra.mxu0 0.0
    %397 = vmatprep.subr.mxu0 0.0
    %398 = vmatpush1.msra.mxu0 0.0
    %399 = vmatprep.subr.mxu0 0.0
    %400 = vmatpush1.msra.mxu0 0.0
    %401 = vmatprep.subr.mxu0 0.0
    %402 = vmatpush1.msra.mxu0 0.0
    %403 = vmatprep.subr.mxu0 0.0
    %404 = vmatpush1.msra.mxu0 0.0
    %405 = vmatprep.subr.mxu0 0.0
    %406 = vmatpush1.msra.mxu0 0.0
    %407 = vmatprep.subr.mxu0 0.0
    %408 = vmatpush1.msra.mxu0 0.0
    %409 = vmatprep.subr.mxu0 0.0
    %410 = vmatpush1.msra.mxu0 0.0
    %411 = vmatprep.subr.mxu0 0.0
    %412 = vmatpush1.msra.mxu0 0.0
    %413 = vmatprep.mubr.f32.mxu0 0.0
    %v414 = vand.u32 %v94, 4294901760
    %v415 = vsub.f32 %v94, %v414
    %v416 = vand.u32 %v415, 4294901760
    %417 = vmatmul.mubr.f32.gmra.mrb[0].mxu0 %v416
    %v418 = vpop.f32.mrb[0].mxu0
    %v419 = vadd.f32 %v338, %v418
    %v420 = vpop.f32.mrb[0].mxu0
    %421 = vmatprep.mubr.f32.mxu0 0.0
    %v422 = vand.u32 %v97, 4294901760
    %v423 = vsub.f32 %v97, %v422
    %v424 = vand.u32 %v423, 4294901760
    %425 = vmatmul.mubr.f32.gmra.mrb[0].mxu0 %v424
    %v426 = vpop.f32.mrb[0].mxu0
    %v427 = vadd.f32 %v345, %v426
    %v428 = vpop.f32.mrb[0].mxu0
    %429 = vdwg.mxu0
    %430 = vmatprep.subr.mxu0 0.0
    %v431 = vand.u32 %v59, 4294901760
    %v432 = vsub.f32 %v59, %v431
    %v433 = vand.u32 %v432, 4294901760
    %434 = vmatpush1.msra.mxu0 %v433
    %435 = vmatprep.subr.mxu0 0.0
    %436 = vmatpush1.msra.mxu0 0.0
    %437 = vmatprep.subr.mxu0 0.0
    %438 = vmatpush1.msra.mxu0 0.0
    %439 = vmatprep.subr.mxu0 0.0
    %440 = vmatpush1.msra.mxu0 0.0
    %441 = vmatprep.subr.mxu0 0.0
    %442 = vmatpush1.msra.mxu0 0.0
    %443 = vmatprep.subr.mxu0 0.0
    %444 = vmatpush1.msra.mxu0 0.0
    %445 = vmatprep.subr.mxu0 0.0
    %446 = vmatpush1.msra.mxu0 0.0
    %447 = vmatprep.subr.mxu0 0.0
    %448 = vmatpush1.msra.mxu0 0.0
    %449 = vmatprep.subr.mxu0 0.0
    %450 = vmatpush1.msra.mxu0 0.0
    %451 = vmatprep.subr.mxu0 0.0
    %452 = vmatpush1.msra.mxu0 0.0
    %453 = vmatprep.subr.mxu0 0.0
    %454 = vmatpush1.msra.mxu0 0.0
    %455 = vmatprep.subr.mxu0 0.0
    %456 = vmatpush1.msra.mxu0 0.0
    %457 = vmatprep.subr.mxu0 0.0
    %458 = vmatpush1.msra.mxu0 0.0
    %459 = vmatprep.subr.mxu0 0.0
    %460 = vmatpush1.msra.mxu0 0.0
    %461 = vmatprep.subr.mxu0 0.0
    %462 = vmatpush1.msra.mxu0 0.0
    %463 = vmatprep.subr.mxu0 0.0
    %464 = vmatpush1.msra.mxu0 0.0
    %465 = vmatprep.subr.mxu0 0.0
    %466 = vmatpush1.msra.mxu0 0.0
    %467 = vmatprep.subr.mxu0 0.0
    %468 = vmatpush1.msra.mxu0 0.0
    %469 = vmatprep.subr.mxu0 0.0
    %470 = vmatpush1.msra.mxu0 0.0
    %471 = vmatprep.subr.mxu0 0.0
    %472 = vmatpush1.msra.mxu0 0.0
    %473 = vmatprep.subr.mxu0 0.0
    %474 = vmatpush1.msra.mxu0 0.0
    %475 = vmatprep.subr.mxu0 0.0
    %476 = vmatpush1.msra.mxu0 0.0
    %477 = vmatprep.subr.mxu0 0.0
    %478 = vmatpush1.msra.mxu0 0.0
    %479 = vmatprep.subr.mxu0 0.0
    %480 = vmatpush1.msra.mxu0 0.0
    %481 = vmatprep.subr.mxu0 0.0
    %482 = vmatpush1.msra.mxu0 0.0
    %483 = vmatprep.subr.mxu0 0.0
    %484 = vmatpush1.msra.mxu0 0.0
    %485 = vmatprep.subr.mxu0 0.0
    %486 = vmatpush1.msra.mxu0 0.0
    %487 = vmatprep.subr.mxu0 0.0
    %488 = vmatpush1.msra.mxu0 0.0
    %489 = vmatprep.subr.mxu0 0.0
    %490 = vmatpush1.msra.mxu0 0.0
    %491 = vmatprep.subr.mxu0 0.0
    %492 = vmatpush1.msra.mxu0 0.0
    %493 = vmatprep.subr.mxu0 0.0
    %494 = vmatpush1.msra.mxu0 0.0
    %495 = vmatprep.subr.mxu0 0.0
    %496 = vmatpush1.msra.mxu0 0.0
    %497 = vmatprep.mubr.f32.mxu0 0.0
    %v498 = vand.u32 %v94, 4294901760
    %499 = vmatmul.mubr.f32.gmra.mrb[0].mxu0 %v498
    %v500 = vpop.f32.mrb[0].mxu0
    %v501 = vadd.f32 %v419, %v500
    %v502 = vpop.f32.mrb[0].mxu0
    %503 = vmatprep.mubr.f32.mxu0 0.0
    %v504 = vand.u32 %v97, 4294901760
    %505 = vmatmul.mubr.f32.gmra.mrb[0].mxu0 %v504
    %v506 = vpop.f32.mrb[0].mxu0
    %v507 = vadd.f32 %v427, %v506
    %v508 = vpop.f32.mrb[0].mxu0
    %509 = vdwg.mxu0
    %510 = vmatprep.subr.mxu0 0.0
    %v511 = vand.u32 %v59, 4294901760
    %512 = vmatpush1.msra.mxu0 %v511
    %513 = vmatprep.subr.mxu0 0.0
    %514 = vmatpush1.msra.mxu0 0.0
    %515 = vmatprep.subr.mxu0 0.0
    %516 = vmatpush1.msra.mxu0 0.0
    %517 = vmatprep.subr.mxu0 0.0
    %518 = vmatpush1.msra.mxu0 0.0
    %519 = vmatprep.subr.mxu0 0.0
    %520 = vmatpush1.msra.mxu0 0.0
    %521 = vmatprep.subr.mxu0 0.0
    %522 = vmatpush1.msra.mxu0 0.0
    %523 = vmatprep.subr.mxu0 0.0
    %524 = vmatpush1.msra.mxu0 0.0
    %525 = vmatprep.subr.mxu0 0.0
    %526 = vmatpush1.msra.mxu0 0.0
    %527 = vmatprep.subr.mxu0 0.0
    %528 = vmatpush1.msra.mxu0 0.0
    %529 = vmatprep.subr.mxu0 0.0
    %530 = vmatpush1.msra.mxu0 0.0
    %531 = vmatprep.subr.mxu0 0.0
    %532 = vmatpush1.msra.mxu0 0.0
    %533 = vmatprep.subr.mxu0 0.0
    %534 = vmatpush1.msra.mxu0 0.0
    %535 = vmatprep.subr.mxu0 0.0
    %536 = vmatpush1.msra.mxu0 0.0
    %537 = vmatprep.subr.mxu0 0.0
    %538 = vmatpush1.msra.mxu0 0.0
    %539 = vmatprep.subr.mxu0 0.0
    %540 = vmatpush1.msra.mxu0 0.0
    %541 = vmatprep.subr.mxu0 0.0
    %542 = vmatpush1.msra.mxu0 0.0
    %543 = vmatprep.subr.mxu0 0.0
    %544 = vmatpush1.msra.mxu0 0.0
    %545 = vmatprep.subr.mxu0 0.0
    %546 = vmatpush1.msra.mxu0 0.0
    %547 = vmatprep.subr.mxu0 0.0
    %548 = vmatpush1.msra.mxu0 0.0
    %549 = vmatprep.subr.mxu0 0.0
    %550 = vmatpush1.msra.mxu0 0.0
    %551 = vmatprep.subr.mxu0 0.0
    %552 = vmatpush1.msra.mxu0 0.0
    %553 = vmatprep.subr.mxu0 0.0
    %554 = vmatpush1.msra.mxu0 0.0
    %555 = vmatprep.subr.mxu0 0.0
    %556 = vmatpush1.msra.mxu0 0.0
    %557 = vmatprep.subr.mxu0 0.0
    %558 = vmatpush1.msra.mxu0 0.0
    %559 = vmatprep.subr.mxu0 0.0
    %560 = vmatpush1.msra.mxu0 0.0
    %561 = vmatprep.subr.mxu0 0.0
    %562 = vmatpush1.msra.mxu0 0.0
    %563 = vmatprep.subr.mxu0 0.0
    %564 = vmatpush1.msra.mxu0 0.0
    %565 = vmatprep.subr.mxu0 0.0
    %566 = vmatpush1.msra.mxu0 0.0
    %567 = vmatprep.subr.mxu0 0.0
    %568 = vmatpush1.msra.mxu0 0.0
    %569 = vmatprep.subr.mxu0 0.0
    %570 = vmatpush1.msra.mxu0 0.0
    %571 = vmatprep.subr.mxu0 0.0
    %572 = vmatpush1.msra.mxu0 0.0
    %573 = vmatprep.subr.mxu0 0.0
    %574 = vmatpush1.msra.mxu0 0.0
    %575 = vmatprep.mubr.f32.mxu0 0.0
    %v576 = vand.u32 %v94, 4294901760
    %577 = vmatmul.mubr.f32.gmra.mrb[0].mxu0 %v576
    %v578 = vpop.f32.mrb[0].mxu0
    %v579 = vadd.f32 %v501, %v578
    %v580 = vpop.f32.mrb[0].mxu0
    %581 = vmatprep.mubr.f32.mxu0 0.0
    %v582 = vand.u32 %v97, 4294901760
    %583 = vmatmul.mubr.f32.gmra.mrb[0].mxu0 %v582
    %v584 = vpop.f32.mrb[0].mxu0
    %v585 = vadd.f32 %v507, %v584
    %v586 = vpop.f32.mrb[0].mxu0
    %587 = vdwg.mxu0
    %588 = vst [vmem:[#allocation7] sm:$0xff] %v579
    %589 = vst [vmem:[#allocation7 + $0x8] sm:$0xff] %v585
    // Predicated region
    $region18: #{tpu_custom_call.1} parent=1 // pred_check
      _
    $region19: #{tpu_custom_call.1} parent=1 // pred_check_branch
      %591 = sbr.rel (0) target = $region21
    $region20: #{tpu_custom_call.1} parent=1 // pred_region
      %s593 = ssub.s32 256, 256
      %594 = vsyncadd [#allocation4], %s593
      %s595 = sshll.u32 [#allocation7], 4
      %s596 = int_to_ptr.vmem [resolvable:$true] %s595
      %601 = dma.vmem_to_hbm [thread:$0]  %s596, 256, %s2, [#allocation4], 128, 128, 8
    $region21: #{tpu_custom_call.1} parent=1 // pred_fallthru
      _
    // Predicated region
    $region22: #{tpu_custom_call.1} parent=1 // pred_check
      _
    $region23: #{tpu_custom_call.1} parent=1 // pred_check_branch
      %603 = sbr.rel (0) target = $region25
    $region24: #{tpu_custom_call.1} parent=1 // pred_region
      %604 = dma.done [#allocation4], 256
    $region25: #{tpu_custom_call.1} parent=1 // pred_fallthru
      _
    %605 = vsyncpa [#allocation3], 1
    %606 = vsyncpa [#allocation6], 1
    %607 = vsyncpa [#allocation4], 1

</llo_original>
